<compile_context>
chip_gen: v6e
topology: v6e:2x2x1
jax: 0.10.0
libtpu: 0.0.40
codegen_flags: <defaults>
</compile_context>

<pallas_src>
import jax
import jax.numpy as jnp
from jax.experimental import pallas as pl
from jax.experimental.pallas import tpu as pltpu  # noqa: F401  (TPU backend)

# Problem sizes (small, consistent with the forward pass).
B, C, H, W = 2, 3, 16, 16          # NCHW input, like PyTorch
PATCH = 4
P = (H // PATCH) * (W // PATCH)    # 16 patches per image
BP = B * P                         # 32 patch rows
K = C * PATCH * PATCH              # 48 true features per patch
KP = 128                           # contraction dim zero-padded to lane width
D = 64                             # encoder feature dim == head.fc.in_features
NUM_CLASSES = 7
OUT_PAD = 128                      # lane-dense padded head width
B_PAD = 8                          # sublane-dense padded output rows


def encoder_head_kernel(x_ref, w1_ref, b1_ref, w2_ref, b2_ref, o_ref):
    # x_ref:  [BP, KP]        bf16 patchified pixels (zero-padded K)
    # w1_ref: [KP, D]         bf16 patch-embed weight (zero-padded K)
    # b1_ref: [1, D]          f32  patch-embed bias
    # w2_ref: [D, OUT_PAD]    bf16 head weight (Linear(num_head, 7), zero-padded N)
    # b2_ref: [1, OUT_PAD]    f32  head bias (zero-padded N)
    # o_ref:  [B_PAD, OUT_PAD] f32 padded logits; wrapper slices [:B, :7]
    h = jnp.dot(x_ref[...], w1_ref[...],
                preferred_element_type=jnp.float32) + b1_ref[...]     # [BP, D] f32
    h = jax.nn.gelu(h, approximate=True)                              # VPU/EUP, f32
    # Global average pool in-kernel (sublane reduction), no pool matrix.
    pooled = jnp.sum(h.reshape(B, P, D), axis=1) * (1.0 / P)          # [B, D] f32
    # Head matmul in bf16 -> single MXU pass on v5e/v6e/v7x; accumulate in f32.
    logits = jnp.dot(pooled.astype(jnp.bfloat16), w2_ref[...],
                     preferred_element_type=jnp.float32) + b2_ref[...]  # [B, OUT_PAD]
    # Fill all 8 sublanes (rows B..7 are duplicates, sliced off by the wrapper)
    # so the result store is an unmasked full-tile vst.
    o_ref[...] = jnp.tile(logits, (B_PAD // B, 1))


@jax.jit
def network_forward(x_nchw, prepared_params):
    """prepared_params = prepare_params(init_params(...)) — padded/cast once."""
    w1_p, b1, w2_p, b2_p = prepared_params

    # Glue: cast to bf16 BEFORE the 6-D patchify transpose (halves bytes moved),
    # NCHW -> [B, P, C*ph*pw] -> [BP, K], then a fused lane pad K=48 -> 128.
    xp = x_nchw.astype(jnp.bfloat16)
    xp = xp.reshape(B, C, H // PATCH, PATCH, W // PATCH, PATCH)
    xp = xp.transpose(0, 2, 4, 1, 3, 5).reshape(BP, K)
    xp_p = jnp.pad(xp, ((0, 0), (0, KP - K)))                         # [BP, KP] bf16

    # Advisory cost estimate with TRUE dims (K=48, 7 classes), not padded ones.
    cost = pl.CostEstimate(
        flops=2 * BP * K * D + 2 * B * D * NUM_CLASSES,
        transcendentals=BP * D,
        bytes_accessed=(BP * K * 2 + K * D * 2 + D * 4
                        + D * NUM_CLASSES * 2 + NUM_CLASSES * 4
                        + B * NUM_CLASSES * 4),
    )

    out_padded = pl.pallas_call(
        encoder_head_kernel,
        out_shape=jax.ShapeDtypeStruct((B_PAD, OUT_PAD), jnp.float32),
        in_specs=[
            pl.BlockSpec((BP, KP), lambda: (0, 0)),
            pl.BlockSpec((KP, D), lambda: (0, 0)),
            pl.BlockSpec((1, D), lambda: (0, 0)),
            pl.BlockSpec((D, OUT_PAD), lambda: (0, 0)),
            pl.BlockSpec((1, OUT_PAD), lambda: (0, 0)),
        ],
        out_specs=pl.BlockSpec((B_PAD, OUT_PAD), lambda: (0, 0)),
        cost_estimate=cost,
    )(xp_p, w1_p, b1, w2_p, b2_p)

    return out_padded[:B, :NUM_CLASSES]


def init_params(key):
    """Unpadded, f32 'PyTorch-like' parameters."""
    k1, k2 = jax.random.split(key)
    w1 = 0.02 * jax.random.normal(k1, (K, D), jnp.float32)
    b1 = jnp.zeros((1, D), jnp.float32)
    w2 = 0.02 * jax.random.normal(k2, (D, NUM_CLASSES), jnp.float32)
    b2 = jnp.zeros((1, NUM_CLASSES), jnp.float32)
    return w1, b1, w2, b2


def prepare_params(params):
    """One-time weight-side padding / casting (hoisted out of the per-call path)."""
    w1, b1, w2, b2 = params
    w1_p = jnp.zeros((KP, D), jnp.bfloat16).at[:K, :].set(w1.astype(jnp.bfloat16))
    w2_p = jnp.zeros((D, OUT_PAD), jnp.bfloat16).at[:, :NUM_CLASSES].set(
        w2.astype(jnp.bfloat16))
    b2_p = jnp.zeros((1, OUT_PAD), jnp.float32).at[:, :NUM_CLASSES].set(b2)
    return w1_p, b1, w2_p, b2_p


if __name__ == "__main__":
    key = jax.random.PRNGKey(0)
    kparam, kx = jax.random.split(key)
    params = init_params(kparam)
    prepared = prepare_params(params)        # padded/cast once, reused per call
    x = jax.random.normal(kx, (B, C, H, W), jnp.float32)   # NCHW, like PyTorch

    logits = network_forward(x, prepared)
    logits = jax.block_until_ready(logits)
    assert logits.shape == (B, NUM_CLASSES)
    assert logits.dtype == jnp.float32
    print("KERNEL_OK")
</pallas_src>

<mosaic_0001>
module attributes {stable_mosaic.version = 11 : i64} {
  func.func @encoder_head_kernel(%arg0: memref<32x128xbf16, #tpu.memory_space<vmem>>, %arg1: memref<128x64xbf16, #tpu.memory_space<vmem>>, %arg2: memref<1x64xf32, #tpu.memory_space<vmem>>, %arg3: memref<64x128xbf16, #tpu.memory_space<vmem>>, %arg4: memref<1x128xf32, #tpu.memory_space<vmem>>, %arg5: memref<8x128xf32, #tpu.memory_space<vmem>>) attributes {dimension_semantics = [], scalar_prefetch = 0 : i64, scratch_operands = 0 : i64, tpu.core_type = #tpu.core_type<tc>} {
    %c0 = arith.constant 0 : index
    %c0_0 = arith.constant 0 : index
    %0 = vector.load %arg0[%c0, %c0_0] : memref<32x128xbf16, #tpu.memory_space<vmem>>, vector<32x128xbf16>
    %c0_1 = arith.constant 0 : index
    %c0_2 = arith.constant 0 : index
    %1 = vector.load %arg1[%c0_1, %c0_2] : memref<128x64xbf16, #tpu.memory_space<vmem>>, vector<128x64xbf16>
    %cst = arith.constant dense<0.000000e+00> : vector<32x64xf32>
    %2 = tpu.matmul %0, %1, %cst {dimension_numbers = #tpu.dot_dimension_numbers<[1], [0], [0], [1], [0, 0, 1, 1], [], []>} : vector<32x128xbf16>, vector<128x64xbf16>, vector<32x64xf32> -> vector<32x64xf32>
    %c0_3 = arith.constant 0 : index
    %c0_4 = arith.constant 0 : index
    %3 = vector.load %arg2[%c0_3, %c0_4] : memref<1x64xf32, #tpu.memory_space<vmem>>, vector<1x64xf32>
    %4 = vector.broadcast %3 : vector<1x64xf32> to vector<32x64xf32>
    %5 = arith.addf %2, %4 : vector<32x64xf32>
    %6 = arith.mulf %5, %5 : vector<32x64xf32>
    %7 = arith.mulf %5, %6 : vector<32x64xf32>
    %cst_5 = arith.constant 4.471500e-02 : f32
    %8 = vector.broadcast %cst_5 : f32 to vector<32x64xf32>
    %9 = arith.mulf %8, %7 : vector<32x64xf32>
    %10 = arith.addf %5, %9 : vector<32x64xf32>
    %cst_6 = arith.constant 0.797884583 : f32
    %11 = vector.broadcast %cst_6 : f32 to vector<32x64xf32>
    %12 = arith.mulf %11, %10 : vector<32x64xf32>
    %13 = math.tanh %12 : vector<32x64xf32>
    %cst_7 = arith.constant 1.000000e+00 : f32
    %14 = vector.broadcast %cst_7 : f32 to vector<32x64xf32>
    %15 = arith.addf %14, %13 : vector<32x64xf32>
    %cst_8 = arith.constant 5.000000e-01 : f32
    %16 = vector.broadcast %cst_8 : f32 to vector<32x64xf32>
    %17 = arith.mulf %16, %15 : vector<32x64xf32>
    %18 = arith.mulf %5, %17 : vector<32x64xf32>
    %19 = vector.shape_cast %18 : vector<32x64xf32> to vector<2x16x64xf32>
    %cst_9 = arith.constant dense<0.000000e+00> : vector<2x64xf32>
    %20 = vector.multi_reduction <add>, %19, %cst_9 [1] : vector<2x16x64xf32> to vector<2x64xf32>
    %cst_10 = arith.constant 6.250000e-02 : f32
    %21 = vector.broadcast %cst_10 : f32 to vector<2x64xf32>
    %22 = arith.mulf %20, %21 : vector<2x64xf32>
    %23 = arith.truncf %22 : vector<2x64xf32> to vector<2x64xbf16>
    %c0_11 = arith.constant 0 : index
    %c0_12 = arith.constant 0 : index
    %24 = vector.load %arg3[%c0_11, %c0_12] : memref<64x128xbf16, #tpu.memory_space<vmem>>, vector<64x128xbf16>
    %cst_13 = arith.constant dense<0.000000e+00> : vector<2x128xf32>
    %25 = tpu.matmul %23, %24, %cst_13 {dimension_numbers = #tpu.dot_dimension_numbers<[1], [0], [0], [1], [0, 0, 1, 1], [], []>} : vector<2x64xbf16>, vector<64x128xbf16>, vector<2x128xf32> -> vector<2x128xf32>
    %c0_14 = arith.constant 0 : index
    %c0_15 = arith.constant 0 : index
    %26 = vector.load %arg4[%c0_14, %c0_15] : memref<1x128xf32, #tpu.memory_space<vmem>>, vector<1x128xf32>
    %27 = vector.broadcast %26 : vector<1x128xf32> to vector<2x128xf32>
    %28 = arith.addf %25, %27 : vector<2x128xf32>
    %29 = tpu.concatenate %28, %28, %28, %28 in 0 : vector<2x128xf32>, vector<2x128xf32>, vector<2x128xf32>, vector<2x128xf32> -> vector<8x128xf32>
    %c0_16 = arith.constant 0 : index
    %c0_17 = arith.constant 0 : index
    %30 = vector.load %arg5[%c0_16, %c0_17] : memref<8x128xf32, #tpu.memory_space<vmem>>, vector<8x128xf32>
    tpu.vector_store %arg5[%c0_16, %c0_17], %29 {strides = array<i32>} : memref<8x128xf32, #tpu.memory_space<vmem>>, vector<8x128xf32>,
    return
  }
}

</mosaic_0001>

<llo_original>
// kernel: network_forward.1
$region0: #{network_forward.1}
  #allocation0 [shape = 'u32[]', space=smem, size = 0x4, offset = 0x4, fixed_abs, tag = 'smem constant byte address 0x4 - core index']
  #allocation1 [shape = 'u32[144,128]{1,0:T(1,128)}', space=vmem, size = 0x12000, scoped, tag = 'internal scratch']
  %s0 = inlined_call_operand.vmem [shape: bf16[32,128], index: 0, kind: input, shape index: {}]
  %s1 = inlined_call_operand.vmem [shape: bf16[128,64], index: 1, kind: input, shape index: {}]
  %s2 = inlined_call_operand.vmem [shape: f32[1,64], index: 2, kind: input, shape index: {}]
  %s3 = inlined_call_operand.vmem [shape: bf16[64,128], index: 3, kind: input, shape index: {}]
  %s4 = inlined_call_operand.vmem [shape: f32[1,128], index: 4, kind: input, shape index: {}]
  %s5 = inlined_call_operand.vmem [shape: f32[8,128], index: 5, kind: output, shape index: {}]
  %s6 = sld [smem:[#allocation0]]
  $region30: #{network_forward.1} parent=0
    _
  %s8 = ssub.s32 1, %s6
  %s9 = scalar_select 0, %s8, %s6
  // Predicated region
  $region2: #{network_forward.1} parent=0 // pred_check
    _
  $region3: #{network_forward.1} parent=0 // pred_check_branch
    %11 = sbr.rel (0) target = $region5
  $region4: #{network_forward.1} parent=0 // pred_region
    _
  $region5: #{network_forward.1} parent=0 // pred_fallthru
    _
  // Predicated region
  $region6: #{network_forward.1} parent=0 // pred_check
    _
  $region7: #{network_forward.1} parent=0 // pred_check_branch
    %13 = sbr.rel (0) target = $region9
  $region8: #{network_forward.1} parent=0 // pred_region
    _
  $region9: #{network_forward.1} parent=0 // pred_fallthru
    _
  // Predicated region
  $region10: #{network_forward.1} parent=0 // pred_check
    _
  $region11: #{network_forward.1} parent=0 // pred_check_branch
    %15 = sbr.rel (0) target = $region13
  $region12: #{network_forward.1} parent=0 // pred_region
    _
  $region13: #{network_forward.1} parent=0 // pred_fallthru
    _
  // Predicated region
  $region14: #{network_forward.1} parent=0 // pred_check
    _
  $region15: #{network_forward.1} parent=0 // pred_check_branch
    %17 = sbr.rel (0) target = $region17
  $region16: #{network_forward.1} parent=0 // pred_region
    _
  $region17: #{network_forward.1} parent=0 // pred_fallthru
    _
  // Predicated region
  $region18: #{network_forward.1} parent=0 // pred_check
    _
  $region19: #{network_forward.1} parent=0 // pred_check_branch
    %19 = sbr.rel (0) target = $region21
  $region20: #{network_forward.1} parent=0 // pred_region
    _
  $region21: #{network_forward.1} parent=0 // pred_fallthru
    _
  %v21 = vld [vmem:[%s0] sm:$0xf]
  %v22 = vld [vmem:[%s0 + $0x4] sm:$0xf]
  %v23 = vld [vmem:[%s0 + $0x8] sm:$0xf]
  %v24 = vld [vmem:[%s0 + $0xc] sm:$0xf]
  %v25 = vld [vmem:[%s1] sm:$0xf]
  %v26 = vld [vmem:[%s1 + $0x4] sm:$0xf]
  %v27 = vld [vmem:[%s1 + $0x8] sm:$0xf]
  %v28 = vld [vmem:[%s1 + $0xc] sm:$0xf]
  %v29 = vld [vmem:[%s1 + $0x10] sm:$0xf]
  %v30 = vld [vmem:[%s1 + $0x14] sm:$0xf]
  %v31 = vld [vmem:[%s1 + $0x18] sm:$0xf]
  %v32 = vld [vmem:[%s1 + $0x1c] sm:$0xf]
  %v33 = vld [vmem:[%s1 + $0x20] sm:$0xf]
  %v34 = vld [vmem:[%s1 + $0x24] sm:$0xf]
  %v35 = vld [vmem:[%s1 + $0x28] sm:$0xf]
  %v36 = vld [vmem:[%s1 + $0x2c] sm:$0xf]
  %v37 = vld [vmem:[%s1 + $0x30] sm:$0xf]
  %v38 = vld [vmem:[%s1 + $0x34] sm:$0xf]
  %v39 = vld [vmem:[%s1 + $0x38] sm:$0xf]
  %v40 = vld [vmem:[%s1 + $0x3c] sm:$0xf]
  %v41 = vld [vmem:[%s2] sm:$0x1]
  %v43 = vlaneseq
  %v44 = vshrl.u32 %v43, 7
  %v45 = vsub.s32 0, %v44
  %v46 = vrot.slane %v41, %v45
  %v52 = vunpack.c.l.b16 %v21
  %v53 = vunpack.c.l.b16 %v22
  %v54 = vunpack.c.l.b16 %v23
  %v55 = vunpack.c.l.b16 %v24
  %v56 = vpack.c.b16 %v53, %v52
  %v57 = vpack.c.b16 %v55, %v54
  %v76 = vunpack.c.l.b16 %v25
  %v77 = vunpack.c.l.b16 %v26
  %v78 = vunpack.c.l.b16 %v27
  %v79 = vunpack.c.l.b16 %v28
  %v80 = vunpack.c.l.b16 %v29
  %v81 = vunpack.c.l.b16 %v30
  %v82 = vunpack.c.l.b16 %v31
  %v83 = vunpack.c.l.b16 %v32
  %v84 = vunpack.c.l.b16 %v33
  %v85 = vunpack.c.l.b16 %v34
  %v86 = vunpack.c.l.b16 %v35
  %v87 = vunpack.c.l.b16 %v36
  %v88 = vunpack.c.l.b16 %v37
  %v89 = vunpack.c.l.b16 %v38
  %v90 = vunpack.c.l.b16 %v39
  %v91 = vunpack.c.l.b16 %v40
  %v92 = vpack.c.b16 %v77, %v76
  %v93 = vpack.c.b16 %v79, %v78
  %v94 = vpack.c.b16 %v81, %v80
  %v95 = vpack.c.b16 %v83, %v82
  %v96 = vpack.c.b16 %v85, %v84
  %v97 = vpack.c.b16 %v87, %v86
  %v98 = vpack.c.b16 %v89, %v88
  %v99 = vpack.c.b16 %v91, %v90
  %108 = vmatprep.subr.bf16.mxu0 0
  %109 = vmatpush1.bf16.msra.mxu0 %v99
  %110 = vmatprep.subr.bf16.mxu0 0
  %111 = vmatpush1.bf16.msra.mxu0 %v98
  %112 = vmatprep.subr.bf16.mxu0 0
  %113 = vmatpush1.bf16.msra.mxu0 %v97
  %114 = vmatprep.subr.bf16.mxu0 0
  %115 = vmatpush1.bf16.msra.mxu0 %v96
  %116 = vmatprep.subr.bf16.mxu0 0
  %117 = vmatpush1.bf16.msra.mxu0 %v95
  %118 = vmatprep.subr.bf16.mxu0 0
  %119 = vmatpush1.bf16.msra.mxu0 %v94
  %120 = vmatprep.subr.bf16.mxu0 0
  %121 = vmatpush1.bf16.msra.mxu0 %v93
  %122 = vmatprep.subr.bf16.mxu0 0
  %123 = vmatpush1.bf16.msra.mxu0 %v92
  %124 = vmatprep.subr.bf16.mxu0 0
  %125 = vmatpush2.bf16.msra.mxu0 0
  %126 = vmatprep.subr.bf16.mxu0 0
  %127 = vmatpush2.bf16.msra.mxu0 0
  %128 = vmatprep.subr.bf16.mxu0 0
  %129 = vmatpush2.bf16.msra.mxu0 0
  %130 = vmatprep.subr.bf16.mxu0 0
  %131 = vmatpush2.bf16.msra.mxu0 0
  %132 = vmatprep.subr.bf16.mxu0 0
  %133 = vmatpush2.bf16.msra.mxu0 0
  %134 = vmatprep.subr.bf16.mxu0 0
  %135 = vmatpush2.bf16.msra.mxu0 0
  %136 = vmatprep.subr.bf16.mxu0 0
  %137 = vmatpush2.bf16.msra.mxu0 0
  %138 = vmatprep.subr.bf16.mxu0 0
  %139 = vmatpush2.bf16.msra.mxu0 0
  %140 = vmatprep.mubr.bf16.mxu0 0
  %141 = vmatmul.mubr.bf16.gmra.mxu0 %v56
  %v142 = vpop.f32.mrf.mxu0
  %v143 = vadd.f32 %v46, %v142
  %v144 = vpop.f32.mrf.mxu0
  %v145 = vpop.f32.mrf.mxu0
  %v146 = vadd.f32 %v46, %v145
  %v147 = vpop.f32.mrf.mxu0
  %148 = vmatprep.mubr.bf16.mxu0 0
  %149 = vmatmul.mubr.bf16.gmra.mxu0 %v57
  %v150 = vpop.f32.mrf.mxu0
  %v151 = vadd.f32 %v46, %v150
  %v152 = vpop.f32.mrf.mxu0
  %v153 = vpop.f32.mrf.mxu0
  %v154 = vadd.f32 %v46, %v153
  %v155 = vpop.f32.mrf.mxu0
  %156 = vdwg.mxu0
  %v157 = vmul.f32 %v143, %v143
  %v158 = vmul.f32 %v146, %v146
  %v159 = vmul.f32 %v151, %v151
  %v160 = vmul.f32 %v154, %v154
  %v161 = vmul.f32 %v143, %v157
  %v162 = vmul.f32 %v146, %v158
  %v163 = vmul.f32 %v151, %v159
  %v164 = vmul.f32 %v154, %v160
  %v165 = vmul.f32 %v161, 0.044715
  %v166 = vmul.f32 %v162, 0.044715
  %v167 = vmul.f32 %v163, 0.044715
  %v168 = vmul.f32 %v164, 0.044715
  %v169 = vadd.f32 %v143, %v165
  %v170 = vadd.f32 %v146, %v166
  %v171 = vadd.f32 %v151, %v167
  %v172 = vadd.f32 %v154, %v168
  %v173 = vmul.f32 %v169, 0.7978846
  %v174 = vmul.f32 %v170, 0.7978846
  %v175 = vmul.f32 %v171, 0.7978846
  %v176 = vmul.f32 %v172, 0.7978846
  %v177 = vtanh.pop %v173
  %v178 = vtanh.pop %v174
  %v179 = vtanh.pop %v175
  %v180 = vtanh.pop %v176
  %v181 = vadd.f32 %v177, 1.0
  %v182 = vadd.f32 %v178, 1.0
  %v183 = vadd.f32 %v179, 1.0
  %v184 = vadd.f32 %v180, 1.0
  %v185 = vmul.f32 %v181, 0.5
  %v186 = vmul.f32 %v182, 0.5
  %v187 = vmul.f32 %v183, 0.5
  %v188 = vmul.f32 %v184, 0.5
  %v189 = vmul.f32 %v143, %v185
  %v190 = vmul.f32 %v146, %v186
  %v191 = vmul.f32 %v151, %v187
  %v192 = vmul.f32 %v154, %v188
  %vm193 = vcmask 523264
  %v194 = vsel %vm193, %v189, 0.0
  %v195 = vsel %vm193, %v190, 0.0
  %v196 = vadd.f32 %v194, %v195
  %v197 = vrot.slane %v196, 4
  %v198 = vadd.f32 %v196, %v197
  %v199 = vrot.slane %v198, 2
  %v200 = vadd.f32 %v198, %v199
  %v201 = vrot.slane %v200, 1
  %v202 = vadd.f32 %v200, %v201
  %v203 = vsel %vm193, %v191, 0.0
  %v204 = vsel %vm193, %v192, 0.0
  %v205 = vadd.f32 %v203, %v204
  %v206 = vrot.slane %v205, 4
  %v207 = vadd.f32 %v205, %v206
  %v208 = vrot.slane %v207, 2
  %v209 = vadd.f32 %v207, %v208
  %v210 = vrot.slane %v209, 1
  %v211 = vadd.f32 %v209, %v210
  %v212 = vmul.f32 %v202, 0.0625
  %v213 = vmul.f32 %v211, 0.0625
  %v214 = vpack.c.bf16 %v212, %v212
  %v215 = vpack.c.bf16 %v213, %v213
  %v216 = vld [vmem:[%s3] sm:$0xf]
  %v217 = vld [vmem:[%s3 + $0x4] sm:$0xf]
  %v218 = vld [vmem:[%s3 + $0x8] sm:$0xf]
  %v219 = vld [vmem:[%s3 + $0xc] sm:$0xf]
  %v220 = vld [vmem:[%s3 + $0x10] sm:$0xf]
  %v221 = vld [vmem:[%s3 + $0x14] sm:$0xf]
  %v222 = vld [vmem:[%s3 + $0x18] sm:$0xf]
  %v223 = vld [vmem:[%s3 + $0x1c] sm:$0xf]
  %v224 = vld [vmem:[%s4] sm:$0x1]
  %v226 = vlaneseq
  %v227 = vshrl.u32 %v226, 7
  %v228 = vsub.s32 0, %v227
  %v229 = vrot.slane %v224, %v228
  %v233 = vunpack.c.l.b16 %v214
  %v234 = vunpack.c.l.b16 %v215
  %vm235 = vcmask 1041409
  %v236 = vsel %vm235, %v234, %v233
  %v237 = vpack.c.b16 %v236, %v236
  %v246 = vunpack.c.l.b16 %v216
  %v247 = vunpack.c.l.b16 %v217
  %v248 = vunpack.c.l.b16 %v218
  %v249 = vunpack.c.l.b16 %v219
  %v250 = vunpack.c.l.b16 %v220
  %v251 = vunpack.c.l.b16 %v221
  %v252 = vunpack.c.l.b16 %v222
  %v253 = vunpack.c.l.b16 %v223
  %v254 = vpack.c.b16 %v247, %v246
  %v255 = vpack.c.b16 %v249, %v248
  %v256 = vpack.c.b16 %v251, %v250
  %v257 = vpack.c.b16 %v253, %v252
  %v263 = vsel %vm193, %v237, 0
  %265 = vmatprep.subr.bf16.mxu0 0
  %266 = vmatpush1.bf16.msra.mxu0 0
  %267 = vmatprep.subr.bf16.mxu0 0
  %268 = vmatpush1.bf16.msra.mxu0 0
  %269 = vmatprep.subr.bf16.mxu0 0
  %270 = vmatpush1.bf16.msra.mxu0 0
  %271 = vmatprep.subr.bf16.mxu0 0
  %272 = vmatpush1.bf16.msra.mxu0 0
  %273 = vmatprep.subr.bf16.mxu0 0
  %274 = vmatpush1.bf16.msra.mxu0 %v257
  %275 = vmatprep.subr.bf16.mxu0 0
  %276 = vmatpush1.bf16.msra.mxu0 %v256
  %277 = vmatprep.subr.bf16.mxu0 0
  %278 = vmatpush1.bf16.msra.mxu0 %v255
  %279 = vmatprep.subr.bf16.mxu0 0
  %280 = vmatpush1.bf16.msra.mxu0 %v254
  %281 = vmatprep.subr.bf16.mxu0 0
  %282 = vmatpush2.bf16.msra.mxu0 0
  %283 = vmatprep.subr.bf16.mxu0 0
  %284 = vmatpush2.bf16.msra.mxu0 0
  %285 = vmatprep.subr.bf16.mxu0 0
  %286 = vmatpush2.bf16.msra.mxu0 0
  %287 = vmatprep.subr.bf16.mxu0 0
  %288 = vmatpush2.bf16.msra.mxu0 0
  %289 = vmatprep.subr.bf16.mxu0 0
  %290 = vmatpush2.bf16.msra.mxu0 0
  %291 = vmatprep.subr.bf16.mxu0 0
  %292 = vmatpush2.bf16.msra.mxu0 0
  %293 = vmatprep.subr.bf16.mxu0 0
  %294 = vmatpush2.bf16.msra.mxu0 0
  %295 = vmatprep.subr.bf16.mxu0 0
  %296 = vmatpush2.bf16.msra.mxu0 0
  %297 = vmatprep.mubr.bf16.mxu0 0
  %298 = vmatmul.mubr.bf16.gmra.mxu0 %v263
  %v299 = vpop.f32.mrf.mxu0
  %v300 = vadd.f32 %v229, %v299
  %v301 = vpop.f32.mrf.mxu0
  %v302 = vpop.f32.mrf.mxu0
  %v303 = vpop.f32.mrf.mxu0
  %304 = vdwg.mxu0
  %v306 = vrot.slane %v300, 6
  %v308 = vrot.slane %v300, 4
  %v310 = vrot.slane %v300, 2
  %vm312 = vcmask 1041408
  %v313 = vsel %vm312, %v300, %v306
  %vm314 = vcmask 1043456
  %v315 = vsel %vm314, %v313, %v308
  %vm316 = vcmask 1045504
  %v317 = vsel %vm316, %v315, %v310
  %318 = vst [vmem:[%s5] sm:$0xff] %v317
  // Predicated region
  $region22: #{network_forward.1} parent=0 // pred_check
    _
  $region23: #{network_forward.1} parent=0 // pred_check_branch
    %320 = sbr.rel (0) target = $region25
  $region24: #{network_forward.1} parent=0 // pred_region
    _
  $region25: #{network_forward.1} parent=0 // pred_fallthru
    _
  // Predicated region
  $region26: #{network_forward.1} parent=0 // pred_check
    _
  $region27: #{network_forward.1} parent=0 // pred_check_branch
    %322 = sbr.rel (0) target = $region29
  $region28: #{network_forward.1} parent=0 // pred_region
    _
  $region29: #{network_forward.1} parent=0 // pred_fallthru
    _

</llo_original>
